<compile_context>
chip_gen: v7x
topology: tpu7x:2x2x1
jax: 0.10.0
libtpu: 0.0.40
codegen_flags: <defaults>
</compile_context>

<pallas_src>
import functools

import jax
import jax.numpy as jnp
import numpy as np
from jax.experimental import pallas as pl
from jax.experimental.pallas import tpu as pltpu

VMEM_LIMIT = 48 * 1024 * 1024        # explicit scoped-VMEM budget, safe on v5e/v6e/v7x


def _round_up(x, m):
    return ((x + m - 1) // m) * m


def _pad_cast_2d(a, rows, cols, dtype):
    """Return `a` as a (rows, cols) array of `dtype`; no copy if it already conforms."""
    if a.shape == (rows, cols) and a.dtype == dtype:
        return a
    out = jnp.zeros((rows, cols), dtype)
    return out.at[:a.shape[0], :a.shape[1]].set(a.astype(dtype))


def _pick_row_block(n):
    """n is a multiple of 8.  Split into >=2 row blocks when possible (v7x megacore)."""
    if n <= 8:
        return n
    nb = min(128, n // 2)
    nb -= nb % 8
    while nb >= 8:
        if n % nb == 0:
            return nb
        nb -= 8
    return n


# ------------------------------------------------------------------ tiled linear (+bias, act)
def _linear_kernel(x_ref, w_ref, b_ref, o_ref, *, activation):
    acc = jnp.dot(x_ref[...], w_ref[...], preferred_element_type=jnp.float32) + b_ref[...]
    if activation is not None:
        acc = activation(acc)
    o_ref[...] = acc.astype(o_ref.dtype)


def pallas_linear(x, w, b, *, activation=None, out_dtype=jnp.float32, tm=256, tn=512):
    """y = act(x @ w + b). bf16 MXU operands, f32 accumulation, configurable output dtype."""
    M, K = x.shape
    N = w.shape[1]
    Kp = _round_up(K, 128)
    tm = min(tm, _round_up(M, 8))
    Mp = _round_up(M, tm)
    tn = min(tn, _round_up(N, 128))
    Npad = _round_up(N, tn)

    xp = _pad_cast_2d(x, Mp, Kp, jnp.bfloat16)
    wp = _pad_cast_2d(w, Kp, Npad, jnp.bfloat16)
    bp = _pad_cast_2d(b.reshape(1, -1), 1, Npad, jnp.float32)

    out = pl.pallas_call(
        functools.partial(_linear_kernel, activation=activation),
        out_shape=jax.ShapeDtypeStruct((Mp, Npad), out_dtype),
        grid=(Mp // tm, Npad // tn),
        in_specs=[pl.BlockSpec((tm, Kp), lambda i, j: (i, 0)),
                  pl.BlockSpec((Kp, tn), lambda i, j: (0, j)),
                  pl.BlockSpec((1, tn), lambda i, j: (0, j))],
        out_specs=pl.BlockSpec((tm, tn), lambda i, j: (i, j)),
        compiler_params=pltpu.CompilerParams(
            dimension_semantics=("parallel", "parallel"),
            vmem_limit_bytes=VMEM_LIMIT),
    )(xp, wp, bp)
    if (Mp, Npad) != (M, N):
        out = out[:M, :N]
    return out


# ------------------------------------------------------------------------------ GRU cell math
def _gru_cell(gi, h, whh_bf16, bhh):
    """One PyTorch-semantics GRU step given precomputed gi = x@Wih + bih.  gi:(N,3H) h:(N,H)."""
    gh = jnp.dot(h.astype(jnp.bfloat16), whh_bf16,
                 preferred_element_type=jnp.float32) + bhh
    H = h.shape[-1]
    i_r, i_z, i_n = gi[:, :H], gi[:, H:2 * H], gi[:, 2 * H:]
    h_r, h_z, h_n = gh[:, :H], gh[:, H:2 * H], gh[:, 2 * H:]
    r = jax.nn.sigmoid(i_r + h_r)
    z = jax.nn.sigmoid(i_z + h_z)
    n = jnp.tanh(i_n + r * h_n)
    return (1.0 - z) * n + z * h


# -------------------------------------------- kernel: length-masked GRU, final hidden only
def _gru_last_kernel(lens_ref, gi_ref, whh_ref, bhh_ref, last_ref, h_scr, *, tc, unroll):
    t_blk = pl.program_id(1)

    @pl.when(t_blk == 0)
    def _():
        h_scr[...] = jnp.zeros_like(h_scr)

    lens = lens_ref[...]            # (nb, 1) int32
    whh = whh_ref[...]              # (H, 3H) bf16
    bhh = bhh_ref[...]              # (1, 3H) f32
    t0 = t_blk * tc

    def step(s, h):
        h_new = _gru_cell(gi_ref[s].astype(jnp.float32), h, whh, bhh)
        return jnp.where(t0 + s < lens, h_new, h)     # freeze after true length

    h = jax.lax.fori_loop(0, tc, step, h_scr[...], unroll=unroll)
    h_scr[...] = h

    @pl.when(t_blk == pl.num_programs(1) - 1)
    def _():
        last_ref[...] = h


def gru_last(gi_tm, lengths, whh_bf16, bhh):
    """gi_tm: (T, N, 3H) bf16 precomputed input gates.  Returns final hidden (N, H) f32."""
    T, N, H3 = gi_tm.shape
    H = H3 // 3
    tc = min(T, 8)
    Tp = _round_up(T, tc)
    if Tp != T:
        gi_tm = jnp.pad(gi_tm, ((0, Tp - T), (0, 0), (0, 0)))
    nb = _pick_row_block(N)
    lens2d = lengths.reshape(N, 1).astype(jnp.int32)
    return pl.pallas_call(
        functools.partial(_gru_last_kernel, tc=tc, unroll=min(tc, 4)),
        out_shape=jax.ShapeDtypeStruct((N, H), jnp.float32),
        grid=(N // nb, Tp // tc),
        in_specs=[pl.BlockSpec((nb, 1), lambda i, t: (i, 0)),
                  pl.BlockSpec((tc, nb, H3), lambda i, t: (t, i, 0)),
                  pl.BlockSpec((H, H3), lambda i, t: (0, 0)),
                  pl.BlockSpec((1, H3), lambda i, t: (0, 0))],
        out_specs=pl.BlockSpec((nb, H), lambda i, t: (i, 0)),
        scratch_shapes=[pltpu.VMEM((nb, H), jnp.float32)],
        compiler_params=pltpu.CompilerParams(
            dimension_semantics=("parallel", "arbitrary"),
            vmem_limit_bytes=VMEM_LIMIT),
    )(lens2d, gi_tm, whh_bf16, bhh)


# ---------------------------------------- kernel: GRU scan with init hidden, all outputs
def _gru_scan_kernel(lens_ref, init_ref, gi_ref, whh_ref, bhh_ref, outs_ref, h_scr,
                     *, tc, unroll):
    t_blk = pl.program_id(1)

    @pl.when(t_blk == 0)
    def _():
        h_scr[...] = init_ref[...]

    lens = lens_ref[...]
    whh = whh_ref[...]
    bhh = bhh_ref[...]
    t0 = t_blk * tc

    def step(s, h):
        h_new = _gru_cell(gi_ref[s].astype(jnp.float32), h, whh, bhh)
        h_out = jnp.where(t0 + s < lens, h_new, h)
        outs_ref[s] = h_out.astype(outs_ref.dtype)
        return h_out

    h_scr[...] = jax.lax.fori_loop(0, tc, step, h_scr[...], unroll=unroll)


def gru_scan(gi_tm, lengths, init_h, whh_bf16, bhh, *, out_dtype=jnp.bfloat16):
    """gi_tm: (T, N, 3H) bf16, init_h: (N, H) f32.  Returns all hidden states (Tp, N, H)."""
    T, N, H3 = gi_tm.shape
    H = H3 // 3
    tc = min(T, 8)
    Tp = _round_up(T, tc)
    if Tp != T:
        gi_tm = jnp.pad(gi_tm, ((0, Tp - T), (0, 0), (0, 0)))
    nb = _pick_row_block(N)
    lens2d = lengths.reshape(N, 1).astype(jnp.int32)
    return pl.pallas_call(
        functools.partial(_gru_scan_kernel, tc=tc, unroll=min(tc, 4)),
        out_shape=jax.ShapeDtypeStruct((Tp, N, H), out_dtype),
        grid=(N // nb, Tp // tc),
        in_specs=[pl.BlockSpec((nb, 1), lambda i, t: (i, 0)),
                  pl.BlockSpec((nb, H), lambda i, t: (i, 0)),
                  pl.BlockSpec((tc, nb, H3), lambda i, t: (t, i, 0)),
                  pl.BlockSpec((H, H3), lambda i, t: (0, 0)),
                  pl.BlockSpec((1, H3), lambda i, t: (0, 0))],
        out_specs=pl.BlockSpec((tc, nb, H), lambda i, t: (t, i, 0)),
        scratch_shapes=[pltpu.VMEM((nb, H), jnp.float32)],
        compiler_params=pltpu.CompilerParams(
            dimension_semantics=("parallel", "arbitrary"),
            vmem_limit_bytes=VMEM_LIMIT),
    )(lens2d, init_h, gi_tm, whh_bf16, bhh)


# ----------------------------------------------------------------------------- parameters
def init_params(key, vocab, embed, h_enc, h_ctx, h_dec):
    ks = jax.random.split(key, 16)
    s = 0.1

    def nrm(k, shape):
        return jax.random.normal(k, shape, jnp.float32) * s

    return dict(
        enc_emb=nrm(ks[0], (vocab, embed)),
        enc_wih=nrm(ks[1], (embed, 3 * h_enc)),
        enc_whh=nrm(ks[2], (h_enc, 3 * h_enc)),
        enc_bih=nrm(ks[3], (1, 3 * h_enc)),
        enc_bhh=nrm(ks[4], (1, 3 * h_enc)),
        ctx_wih=nrm(ks[5], (h_enc, 3 * h_ctx)),
        ctx_whh=nrm(ks[6], (h_ctx, 3 * h_ctx)),
        ctx_bih=nrm(ks[7], (1, 3 * h_ctx)),
        ctx_bhh=nrm(ks[8], (1, 3 * h_ctx)),
        c2d_w=nrm(ks[9], (h_ctx, h_dec)),      # num_layers = 1
        c2d_b=nrm(ks[10], (1, h_dec)),
        dec_emb=nrm(ks[11], (vocab, embed)),
        dec_wih=nrm(ks[12], (embed, 3 * h_dec)),
        dec_whh=nrm(ks[13], (h_dec, 3 * h_dec)),
        dec_bih=nrm(ks[14], (1, 3 * h_dec)),
        dec_bhh=nrm(ks[15], (1, 3 * h_dec)),
        dec_wout=nrm(jax.random.fold_in(key, 100), (h_dec, vocab)),
        dec_bout=nrm(jax.random.fold_in(key, 101), (1, vocab)),
    )


_BF16_KEYS = ("enc_emb", "dec_emb", "enc_wih", "ctx_wih", "dec_wih",
              "enc_whh", "ctx_whh", "dec_whh", "c2d_w", "dec_wout")


def prepare_params(p):
    """One-time bf16 cast of all MXU weight matrices / embedding tables (biases stay f32)."""
    q = dict(p)
    for k in _BF16_KEYS:
        q[k] = p[k].astype(jnp.bfloat16)
    return q


# ----------------------------------------------------------------------------- HRED forward
def hred_forward(params, input_sentences, input_lengths, input_turns, target_sentences):
    """decode=False path. Returns decoder_outputs: (num_sentences, seq_len, vocab) bf16."""
    N, T = input_sentences.shape
    turns = [int(t) for t in input_turns]          # concrete python ints (HRED uses .tolist())
    B = len(turns)
    max_turn = max(turns)

    E = params["enc_emb"].shape[1]
    He = params["enc_whh"].shape[0]
    Hc = params["ctx_whh"].shape[0]
    Hd = params["dec_whh"].shape[0]
    V = params["dec_wout"].shape[1]

    Np = _round_up(N, 8)           # sublane-aligned sentence batch
    Bp = _round_up(B, 8)           # sublane-aligned conversation batch
    pad_n = Np - N

    in_sent = jnp.pad(input_sentences, ((0, pad_n), (0, 0)))
    tgt_sent = jnp.pad(target_sentences, ((0, pad_n), (0, 0)))
    lens = jnp.pad(input_lengths.astype(jnp.int32), (0, pad_n))   # padded rows -> length 0

    # --- sentence encoder --------------------------------------------------------
    emb = jnp.take(params["enc_emb"], in_sent, axis=0)             # (Np, T, E) bf16 gather
    x_tm = jnp.transpose(emb, (1, 0, 2)).reshape(T * Np, E)        # time-major, flattened
    gi_enc = pallas_linear(x_tm, params["enc_wih"], params["enc_bih"],
                           out_dtype=jnp.bfloat16).reshape(T, Np, 3 * He)
    enc_hidden = gru_last(gi_enc, lens, params["enc_whh"], params["enc_bhh"])[:N]   # (N, He)

    # --- pack sentences into conversations with ONE gather -----------------------
    start = np.concatenate([[0], np.cumsum(turns)[:-1]]).astype(np.int32)
    t_idx = np.arange(max_turn, dtype=np.int32)
    sent_idx = start[None, :] + t_idx[:, None]                      # (max_turn, B)
    valid = t_idx[:, None] < np.asarray(turns, np.int32)[None, :]
    sent_idx = np.where(valid, sent_idx, 0)
    ctx_in = jnp.where(jnp.asarray(valid)[:, :, None],
                       enc_hidden[jnp.asarray(sent_idx)], 0.0)      # (max_turn, B, He)
    ctx_in = jnp.pad(ctx_in, ((0, 0), (0, Bp - B), (0, 0)))
    turn_lens = jnp.pad(jnp.asarray(turns, jnp.int32), (0, Bp - B))

    # --- context encoder ----------------------------------------------------------
    gi_ctx = pallas_linear(ctx_in.reshape(max_turn * Bp, He),
                           params["ctx_wih"], params["ctx_bih"],
                           out_dtype=jnp.bfloat16).reshape(max_turn, Bp, 3 * Hc)
    ctx_outs = gru_scan(gi_ctx, turn_lens, jnp.zeros((Bp, Hc), jnp.float32),
                        params["ctx_whh"], params["ctx_bhh"])[:max_turn]   # (max_turn, Bp, Hc)

    # --- unpack conversation outputs to per-sentence order with ONE gather --------
    conv_idx = np.concatenate([np.full(l, b, np.int32) for b, l in enumerate(turns)])
    pos_idx = np.concatenate([np.arange(l, dtype=np.int32) for l in turns])
    ctx_cat = ctx_outs[jnp.asarray(pos_idx), jnp.asarray(conv_idx)]   # (N, Hc) bf16

    # --- context2decoder (linear + tanh, 1 decoder layer) -------------------------
    dec_init = pallas_linear(ctx_cat, params["c2d_w"], params["c2d_b"],
                             activation=jnp.tanh, out_dtype=jnp.float32)  # (N, Hd)
    dec_init = jnp.pad(dec_init, ((0, pad_n), (0, 0)))               # (Np, Hd)

    # --- decoder GRU (teacher forcing): hidden states only ------------------------
    tgt_emb = jnp.take(params["dec_emb"], tgt_sent, axis=0)          # (Np, T, E) bf16
    tgt_tm = jnp.transpose(tgt_emb, (1, 0, 2)).reshape(T * Np, E)
    gi_dec = pallas_linear(tgt_tm, params["dec_wih"], params["dec_bih"],
                           out_dtype=jnp.bfloat16).reshape(T, Np, 3 * Hd)
    hs_tm = gru_scan(gi_dec, jnp.full((Np,), T, jnp.int32), dec_init,
                     params["dec_whh"], params["dec_bhh"])[:T]       # (T, Np, Hd) bf16

    # --- vocab projection: one big tiled, V-tiled, parallel matmul ----------------
    hs_bm = jnp.transpose(hs_tm, (1, 0, 2)).reshape(Np * T, Hd)      # bf16 transpose (cheap)
    logits = pallas_linear(hs_bm, params["dec_wout"], params["dec_bout"],
                           out_dtype=jnp.bfloat16, tm=1024, tn=512)  # (Np*T, V) bf16
    return logits.reshape(Np, T, V)[:N]                              # (N, T, V)


# ----------------------------------------------------------------------------- main
if __name__ == "__main__":
    VOCAB, EMBED, H_ENC, H_CTX, H_DEC = 256, 128, 128, 128, 128
    SEQ = 8
    input_turns = [3, 2]                       # 2 conversations -> 5 sentences total
    NUM_SENT = sum(input_turns)

    key = jax.random.PRNGKey(0)
    params = prepare_params(init_params(key, VOCAB, EMBED, H_ENC, H_CTX, H_DEC))

    k1, k2 = jax.random.split(jax.random.fold_in(key, 7))
    input_sentences = jax.random.randint(k1, (NUM_SENT, SEQ), 0, VOCAB, jnp.int32)
    target_sentences = jax.random.randint(k2, (NUM_SENT, SEQ), 0, VOCAB, jnp.int32)
    input_lengths = jnp.asarray([8, 5, 7, 6, 4], jnp.int32)

    out = hred_forward(params, input_sentences, input_lengths, input_turns, target_sentences)
    out = jax.block_until_ready(out)
    assert out.shape == (NUM_SENT, SEQ, VOCAB), out.shape
    assert bool(jnp.all(jnp.isfinite(out.astype(jnp.float32))))
    print("KERNEL_OK")
</pallas_src>

<mosaic_0001>
module attributes {stable_mosaic.version = 11 : i64} {
  func.func @_linear_kernel(%arg0: i32, %arg1: i32, %arg2: memref<64x128xbf16, #tpu.memory_space<vmem>>, %arg3: memref<128x384xbf16, #tpu.memory_space<vmem>>, %arg4: memref<1x384xf32, #tpu.memory_space<vmem>>, %arg5: memref<64x384xbf16, #tpu.memory_space<vmem>>) attributes {dimension_semantics = [#tpu.dimension_semantics<parallel>, #tpu.dimension_semantics<parallel>], iteration_bounds = array<i64: 1, 1>, scalar_prefetch = 0 : i64, scratch_operands = 0 : i64, tpu.core_type = #tpu.core_type<tc>, window_params = [{transform_indices = @transform_0, window_bounds = array<i64: 64, 128>}, {transform_indices = @transform_1, window_bounds = array<i64: 128, 384>}, {transform_indices = @transform_2, window_bounds = array<i64: 1, 384>}, {transform_indices = @transform_3, window_bounds = array<i64: 64, 384>}]} {
    %c0 = arith.constant 0 : index
    %c0_0 = arith.constant 0 : index
    %0 = vector.load %arg2[%c0, %c0_0] : memref<64x128xbf16, #tpu.memory_space<vmem>>, vector<64x128xbf16>
    %c0_1 = arith.constant 0 : index
    %c0_2 = arith.constant 0 : index
    %1 = vector.load %arg3[%c0_1, %c0_2] : memref<128x384xbf16, #tpu.memory_space<vmem>>, vector<128x384xbf16>
    %cst = arith.constant dense<0.000000e+00> : vector<64x384xf32>
    %2 = tpu.matmul %0, %1, %cst {dimension_numbers = #tpu.dot_dimension_numbers<[1], [0], [0], [1], [0, 0, 1, 1], [], []>} : vector<64x128xbf16>, vector<128x384xbf16>, vector<64x384xf32> -> vector<64x384xf32>
    %c0_3 = arith.constant 0 : index
    %c0_4 = arith.constant 0 : index
    %3 = vector.load %arg4[%c0_3, %c0_4] : memref<1x384xf32, #tpu.memory_space<vmem>>, vector<1x384xf32>
    %4 = vector.broadcast %3 : vector<1x384xf32> to vector<64x384xf32>
    %5 = arith.addf %2, %4 : vector<64x384xf32>
    %6 = arith.truncf %5 : vector<64x384xf32> to vector<64x384xbf16>
    %c0_5 = arith.constant 0 : index
    %c0_6 = arith.constant 0 : index
    %7 = vector.load %arg5[%c0_5, %c0_6] : memref<64x384xbf16, #tpu.memory_space<vmem>>, vector<64x384xbf16>
    tpu.vector_store %arg5[%c0_5, %c0_6], %6 {strides = array<i32>} : memref<64x384xbf16, #tpu.memory_space<vmem>>, vector<64x384xbf16>,
    return
  }
  func.func @transform_0(%arg0: i32, %arg1: i32) -> (i32, i32) {
    %c0_i32 = arith.constant 0 : i32
    %c0_i32_0 = arith.constant 0 : i32
    return %arg0, %c0_i32 : i32, i32
  }
  func.func @transform_1(%arg0: i32, %arg1: i32) -> (i32, i32) {
    %c0_i32 = arith.constant 0 : i32
    %c0_i32_0 = arith.constant 0 : i32
    return %c0_i32, %arg1 : i32, i32
  }
  func.func @transform_2(%arg0: i32, %arg1: i32) -> (i32, i32) {
    %c0_i32 = arith.constant 0 : i32
    %c0_i32_0 = arith.constant 0 : i32
    return %c0_i32, %arg1 : i32, i32
  }
  func.func @transform_3(%arg0: i32, %arg1: i32) -> (i32, i32) {
    %c0_i32 = arith.constant 0 : i32
    return %arg0, %arg1 : i32, i32
  }
}

</mosaic_0001>

<llo_original>
// kernel: tpu_custom_call.1
$region0: #{tpu_custom_call.1}
  #allocation0 [shape = 'u32[]', space=smem, size = 0x4, offset = 0x4, fixed_abs, tag = 'smem constant byte address 0x4 - core index']
  #allocation1 [shape = 'u32[144,128]{1,0:T(1,128)}', space=vmem, size = 0x12000, scoped, tag = 'internal scratch']
  %s0 = inlined_call_operand.hbm [shape: bf16[64,128], index: 0, kind: input, shape index: {}]
  %s1 = inlined_call_operand.hbm [shape: bf16[128,384], index: 1, kind: input, shape index: {}]
  %s2 = inlined_call_operand.vmem [shape: f32[1,384], index: 2, kind: input, shape index: {}]
  %s3 = inlined_call_operand.hbm [shape: bf16[64,384], index: 3, kind: output, shape index: {}]
  %s4 = sld [smem:[#allocation0]]
  $region30: #{tpu_custom_call.1} parent=0
    _
  %s6 = ssub.s32 1, %s4
  %s7 = scalar_select 0, %s6, %s4
  $region1: #{tpu_custom_call.1} parent=0
    #allocation2 [shape = 'u8[16384]{0}', space=vmem, size = 0x4000, scoped, tag = 'input window, operand 0, single buffered']
    #allocation3 [shape = 's32[1]{0}', space=sflag, size = 0x4, scoped, tag = 'scoped memory for tpu_custom_call.1']
    #allocation4 [shape = 's32[1]{0}', space=sflag, size = 0x4, scoped, tag = 'scoped memory for tpu_custom_call.1']
    #allocation5 [shape = 'u8[98304]{0}', space=vmem, size = 0x18000, scoped, tag = 'input window, operand 1, single buffered']
    #allocation6 [shape = 's32[1]{0}', space=sflag, size = 0x4, scoped, tag = 'scoped memory for tpu_custom_call.1']
    #allocation7 [shape = 'u8[49152]{0}', space=vmem, size = 0xc000, scoped, tag = 'output window, operand 0, single buffered']
    %8 = vsyncpa [#allocation3], 0
    %9 = vsyncpa [#allocation6], 0
    %10 = vsyncpa [#allocation4], 0
    // Predicated region
    $region2: #{tpu_custom_call.1} parent=1 // pred_check
      _
    $region3: #{tpu_custom_call.1} parent=1 // pred_check_branch
      %12 = sbr.rel (0) target = $region5
    $region4: #{tpu_custom_call.1} parent=1 // pred_region
      %s14 = ssub.s32 512, 512
      %15 = vsyncadd [#allocation3], %s14
      %s16 = sshll.u32 [#allocation2], 4
      %s17 = int_to_ptr.vmem [resolvable:$true] %s16
      %22 = dma.hbm_to_vmem [thread:$0]  %s0, 512, %s17, [#allocation3], 64, 64, 4
    $region5: #{tpu_custom_call.1} parent=1 // pred_fallthru
      _
    // Predicated region
    $region6: #{tpu_custom_call.1} parent=1 // pred_check
      _
    $region7: #{tpu_custom_call.1} parent=1 // pred_check_branch
      %24 = sbr.rel (0) target = $region9
    $region8: #{tpu_custom_call.1} parent=1 // pred_region
      %s26 = ssub.s32 3072, 3072
      %27 = vsyncadd [#allocation6], %s26
      %s28 = sshll.u32 [#allocation5], 4
      %s29 = int_to_ptr.vmem [resolvable:$true] %s28
      %34 = dma.hbm_to_vmem [thread:$0]  %s1, 3072, %s29, [#allocation6], 192, 192, 12
    $region9: #{tpu_custom_call.1} parent=1 // pred_fallthru
      _
    // Predicated region
    $region10: #{tpu_custom_call.1} parent=1 // pred_check
      _
    $region11: #{tpu_custom_call.1} parent=1 // pred_check_branch
      %36 = sbr.rel (0) target = $region13
    $region12: #{tpu_custom_call.1} parent=1 // pred_region
      _
    $region13: #{tpu_custom_call.1} parent=1 // pred_fallthru
      _
    // Predicated region
    $region14: #{tpu_custom_call.1} parent=1 // pred_check
      _
    $region15: #{tpu_custom_call.1} parent=1 // pred_check_branch
      %38 = sbr.rel (0) target = $region17
    $region16: #{tpu_custom_call.1} parent=1 // pred_region
      %39 = dma.done [#allocation3], 512
    $region17: #{tpu_custom_call.1} parent=1 // pred_fallthru
      _
    // Predicated region
    $region18: #{tpu_custom_call.1} parent=1 // pred_check
      _
    $region19: #{tpu_custom_call.1} parent=1 // pred_check_branch
      %41 = sbr.rel (0) target = $region21
    $region20: #{tpu_custom_call.1} parent=1 // pred_region
      %42 = dma.done [#allocation6], 3072
    $region21: #{tpu_custom_call.1} parent=1 // pred_fallthru
      _
    %v44 = vld [vmem:[#allocation2] sm:$0xf]
    %v45 = vld [vmem:[#allocation2 + $0x4] sm:$0xf]
    %v46 = vld [vmem:[#allocation2 + $0x8] sm:$0xf]
    %v47 = vld [vmem:[#allocation2 + $0xc] sm:$0xf]
    %v48 = vld [vmem:[#allocation2 + $0x10] sm:$0xf]
    %v49 = vld [vmem:[#allocation2 + $0x14] sm:$0xf]
    %v50 = vld [vmem:[#allocation2 + $0x18] sm:$0xf]
    %v51 = vld [vmem:[#allocation2 + $0x1c] sm:$0xf]
    %v52 = vld [vmem:[#allocation5] sm:$0xff]
    %v53 = vld [vmem:[#allocation5 + $0x8] sm:$0xf]
    %v54 = vld [vmem:[#allocation5 + $0xc] sm:$0xff]
    %v55 = vld [vmem:[#allocation5 + $0x14] sm:$0xf]
    %v56 = vld [vmem:[#allocation5 + $0x18] sm:$0xff]
    %v57 = vld [vmem:[#allocation5 + $0x20] sm:$0xf]
    %v58 = vld [vmem:[#allocation5 + $0x24] sm:$0xff]
    %v59 = vld [vmem:[#allocation5 + $0x2c] sm:$0xf]
    %v60 = vld [vmem:[#allocation5 + $0x30] sm:$0xff]
    %v61 = vld [vmem:[#allocation5 + $0x38] sm:$0xf]
    %v62 = vld [vmem:[#allocation5 + $0x3c] sm:$0xff]
    %v63 = vld [vmem:[#allocation5 + $0x44] sm:$0xf]
    %v64 = vld [vmem:[#allocation5 + $0x48] sm:$0xff]
    %v65 = vld [vmem:[#allocation5 + $0x50] sm:$0xf]
    %v66 = vld [vmem:[#allocation5 + $0x54] sm:$0xff]
    %v67 = vld [vmem:[#allocation5 + $0x5c] sm:$0xf]
    %v68 = vld [vmem:[#allocation5 + $0x60] sm:$0xff]
    %v69 = vld [vmem:[#allocation5 + $0x68] sm:$0xf]
    %v70 = vld [vmem:[#allocation5 + $0x6c] sm:$0xff]
    %v71 = vld [vmem:[#allocation5 + $0x74] sm:$0xf]
    %v72 = vld [vmem:[#allocation5 + $0x78] sm:$0xff]
    %v73 = vld [vmem:[#allocation5 + $0x80] sm:$0xf]
    %v74 = vld [vmem:[#allocation5 + $0x84] sm:$0xff]
    %v75 = vld [vmem:[#allocation5 + $0x8c] sm:$0xf]
    %v76 = vld [vmem:[#allocation5 + $0x90] sm:$0xff]
    %v77 = vld [vmem:[#allocation5 + $0x98] sm:$0xf]
    %v78 = vld [vmem:[#allocation5 + $0x9c] sm:$0xff]
    %v79 = vld [vmem:[#allocation5 + $0xa4] sm:$0xf]
    %v80 = vld [vmem:[#allocation5 + $0xa8] sm:$0xff]
    %v81 = vld [vmem:[#allocation5 + $0xb0] sm:$0xf]
    %v82 = vld [vmem:[#allocation5 + $0xb4] sm:$0xff]
    %v83 = vld [vmem:[#allocation5 + $0xbc] sm:$0xf]
    %v84 = vld [vmem:[%s2] sm:$0x7]
    %v86 = vlaneseq
    %v87 = vshrl.u32 %v86, 7
    %v88 = vsub.s32 0, %v87
    %v89 = vrot.slane %v84, %v88
    %v90 = vlaneseq
    %v91 = vshrl.u32 %v90, 7
    %v92 = vsub.s32 1, %v91
    %v93 = vrot.slane %v84, %v92
    %v94 = vlaneseq
    %v95 = vshrl.u32 %v94, 7
    %v96 = vsub.s32 2, %v95
    %v97 = vrot.slane %v84, %v96
    %v109 = vunpack.c.l.b16 %v44
    %v110 = vunpack.c.l.b16 %v45
    %v111 = vunpack.c.l.b16 %v46
    %v112 = vunpack.c.l.b16 %v47
    %v113 = vunpack.c.l.b16 %v48
    %v114 = vunpack.c.l.b16 %v49
    %v115 = vunpack.c.l.b16 %v50
    %v116 = vunpack.c.l.b16 %v51
    %v117 = vpack.c.b16 %v110, %v109
    %v118 = vpack.c.b16 %v112, %v111
    %v119 = vpack.c.b16 %v114, %v113
    %v120 = vpack.c.b16 %v116, %v115
    %v157 = vunpack.c.l.b16 %v52
    %v158 = vunpack.c.h.b16 %v52
    %v159 = vunpack.c.l.b16 %v53
    %v160 = vunpack.c.l.b16 %v54
    %v161 = vunpack.c.h.b16 %v54
    %v162 = vunpack.c.l.b16 %v55
    %v163 = vunpack.c.l.b16 %v56
    %v164 = vunpack.c.h.b16 %v56
    %v165 = vunpack.c.l.b16 %v57
    %v166 = vunpack.c.l.b16 %v58
    %v167 = vunpack.c.h.b16 %v58
    %v168 = vunpack.c.l.b16 %v59
    %v169 = vunpack.c.l.b16 %v60
    %v170 = vunpack.c.h.b16 %v60
    %v171 = vunpack.c.l.b16 %v61
    %v172 = vunpack.c.l.b16 %v62
    %v173 = vunpack.c.h.b16 %v62
    %v174 = vunpack.c.l.b16 %v63
    %v175 = vunpack.c.l.b16 %v64
    %v176 = vunpack.c.h.b16 %v64
    %v177 = vunpack.c.l.b16 %v65
    %v178 = vunpack.c.l.b16 %v66
    %v179 = vunpack.c.h.b16 %v66
    %v180 = vunpack.c.l.b16 %v67
    %v181 = vunpack.c.l.b16 %v68
    %v182 = vunpack.c.h.b16 %v68
    %v183 = vunpack.c.l.b16 %v69
    %v184 = vunpack.c.l.b16 %v70
    %v185 = vunpack.c.h.b16 %v70
    %v186 = vunpack.c.l.b16 %v71
    %v187 = vunpack.c.l.b16 %v72
    %v188 = vunpack.c.h.b16 %v72
    %v189 = vunpack.c.l.b16 %v73
    %v190 = vunpack.c.l.b16 %v74
    %v191 = vunpack.c.h.b16 %v74
    %v192 = vunpack.c.l.b16 %v75
    %v193 = vunpack.c.l.b16 %v76
    %v194 = vunpack.c.h.b16 %v76
    %v195 = vunpack.c.l.b16 %v77
    %v196 = vunpack.c.l.b16 %v78
    %v197 = vunpack.c.h.b16 %v78
    %v198 = vunpack.c.l.b16 %v79
    %v199 = vunpack.c.l.b16 %v80
    %v200 = vunpack.c.h.b16 %v80
    %v201 = vunpack.c.l.b16 %v81
    %v202 = vunpack.c.l.b16 %v82
    %v203 = vunpack.c.h.b16 %v82
    %v204 = vunpack.c.l.b16 %v83
    %v205 = vpack.c.b16 %v160, %v157
    %v206 = vpack.c.b16 %v161, %v158
    %v207 = vpack.c.b16 %v162, %v159
    %v208 = vpack.c.b16 %v166, %v163
    %v209 = vpack.c.b16 %v167, %v164
    %v210 = vpack.c.b16 %v168, %v165
    %v211 = vpack.c.b16 %v172, %v169
    %v212 = vpack.c.b16 %v173, %v170
    %v213 = vpack.c.b16 %v174, %v171
    %v214 = vpack.c.b16 %v178, %v175
    %v215 = vpack.c.b16 %v179, %v176
    %v216 = vpack.c.b16 %v180, %v177
    %v217 = vpack.c.b16 %v184, %v181
    %v218 = vpack.c.b16 %v185, %v182
    %v219 = vpack.c.b16 %v186, %v183
    %v220 = vpack.c.b16 %v190, %v187
    %v221 = vpack.c.b16 %v191, %v188
    %v222 = vpack.c.b16 %v192, %v189
    %v223 = vpack.c.b16 %v196, %v193
    %v224 = vpack.c.b16 %v197, %v194
    %v225 = vpack.c.b16 %v198, %v195
    %v226 = vpack.c.b16 %v202, %v199
    %v227 = vpack.c.b16 %v203, %v200
    %v228 = vpack.c.b16 %v204, %v201
    %253 = vmatprep.subr.bf16.mxu0 %v206
    %254 = vmatpush1.bf16.msra.mxu0 %v205
    %255 = vmatprep.subr.bf16.mxu0 %v209
    %256 = vmatpush1.bf16.msra.mxu0 %v208
    %257 = vmatprep.subr.bf16.mxu0 %v212
    %258 = vmatpush1.bf16.msra.mxu0 %v211
    %259 = vmatprep.subr.bf16.mxu0 %v215
    %260 = vmatpush1.bf16.msra.mxu0 %v214
    %261 = vmatprep.subr.bf16.mxu0 %v218
    %262 = vmatpush1.bf16.msra.mxu0 %v217
    %263 = vmatprep.subr.bf16.mxu0 %v221
    %264 = vmatpush1.bf16.msra.mxu0 %v220
    %265 = vmatprep.subr.bf16.mxu0 %v224
    %266 = vmatpush1.bf16.msra.mxu0 %v223
    %267 = vmatprep.subr.bf16.mxu0 %v227
    %268 = vmatpush1.bf16.msra.mxu0 %v226
    %269 = vmatprep.subr.bf16.mxu0 0
    %270 = vmatpush1.bf16.msra.mxu0 0
    %271 = vmatprep.subr.bf16.mxu0 0
    %272 = vmatpush1.bf16.msra.mxu0 0
    %273 = vmatprep.subr.bf16.mxu0 0
    %274 = vmatpush1.bf16.msra.mxu0 0
    %275 = vmatprep.subr.bf16.mxu0 0
    %276 = vmatpush1.bf16.msra.mxu0 0
    %277 = vmatprep.subr.bf16.mxu0 0
    %278 = vmatpush1.bf16.msra.mxu0 0
    %279 = vmatprep.subr.bf16.mxu0 0
    %280 = vmatpush1.bf16.msra.mxu0 0
    %281 = vmatprep.subr.bf16.mxu0 0
    %282 = vmatpush1.bf16.msra.mxu0 0
    %283 = vmatprep.subr.bf16.mxu0 0
    %284 = vmatpush1.bf16.msra.mxu0 0
    %285 = vmatprep.mubr.bf16.mxu0 0
    %286 = vmatmul.mubr.bf16.gmra.mrb[0].mxu0 %v117
    %v287 = vpop.f32.mrb[0].mxu0
    %v288 = vadd.f32 %v89, %v287
    %v289 = vpop.f32.mrb[0].mxu0
    %v290 = vadd.f32 %v93, %v289
    %v291 = vpop.f32.mrb[0].mxu0
    %v292 = vadd.f32 %v89, %v291
    %v293 = vpop.f32.mrb[0].mxu0
    %v294 = vadd.f32 %v93, %v293
    %295 = vmatprep.mubr.bf16.mxu0 0
    %296 = vmatmul.mubr.bf16.gmra.mrb[0].mxu0 %v118
    %v297 = vpop.f32.mrb[0].mxu0
    %v298 = vadd.f32 %v89, %v297
    %v299 = vpop.f32.mrb[0].mxu0
    %v300 = vadd.f32 %v93, %v299
    %v301 = vpop.f32.mrb[0].mxu0
    %v302 = vadd.f32 %v89, %v301
    %v303 = vpop.f32.mrb[0].mxu0
    %v304 = vadd.f32 %v93, %v303
    %305 = vmatprep.mubr.bf16.mxu0 0
    %306 = vmatmul.mubr.bf16.gmra.mrb[0].mxu0 %v119
    %v307 = vpop.f32.mrb[0].mxu0
    %v308 = vadd.f32 %v89, %v307
    %v309 = vpop.f32.mrb[0].mxu0
    %v310 = vadd.f32 %v93, %v309
    %v311 = vpop.f32.mrb[0].mxu0
    %v312 = vadd.f32 %v89, %v311
    %v313 = vpop.f32.mrb[0].mxu0
    %v314 = vadd.f32 %v93, %v313
    %315 = vmatprep.mubr.bf16.mxu0 0
    %316 = vmatmul.mubr.bf16.gmra.mrb[0].mxu0 %v120
    %v317 = vpop.f32.mrb[0].mxu0
    %v318 = vadd.f32 %v89, %v317
    %v319 = vpop.f32.mrb[0].mxu0
    %v320 = vadd.f32 %v93, %v319
    %v321 = vpop.f32.mrb[0].mxu0
    %v322 = vadd.f32 %v89, %v321
    %v323 = vpop.f32.mrb[0].mxu0
    %v324 = vadd.f32 %v93, %v323
    %325 = vdwg.mxu0
    %326 = vmatprep.subr.bf16.mxu0 0
    %327 = vmatpush1.bf16.msra.mxu0 %v207
    %328 = vmatprep.subr.bf16.mxu0 0
    %329 = vmatpush1.bf16.msra.mxu0 %v210
    %330 = vmatprep.subr.bf16.mxu0 0
    %331 = vmatpush1.bf16.msra.mxu0 %v213
    %332 = vmatprep.subr.bf16.mxu0 0
    %333 = vmatpush1.bf16.msra.mxu0 %v216
    %334 = vmatprep.subr.bf16.mxu0 0
    %335 = vmatpush1.bf16.msra.mxu0 %v219
    %336 = vmatprep.subr.bf16.mxu0 0
    %337 = vmatpush1.bf16.msra.mxu0 %v222
    %338 = vmatprep.subr.bf16.mxu0 0
    %339 = vmatpush1.bf16.msra.mxu0 %v225
    %340 = vmatprep.subr.bf16.mxu0 0
    %341 = vmatpush1.bf16.msra.mxu0 %v228
    %342 = vmatprep.subr.bf16.mxu0 0
    %343 = vmatpush1.bf16.msra.mxu0 0
    %344 = vmatprep.subr.bf16.mxu0 0
    %345 = vmatpush1.bf16.msra.mxu0 0
    %346 = vmatprep.subr.bf16.mxu0 0
    %347 = vmatpush1.bf16.msra.mxu0 0
    %348 = vmatprep.subr.bf16.mxu0 0
    %349 = vmatpush1.bf16.msra.mxu0 0
    %350 = vmatprep.subr.bf16.mxu0 0
    %351 = vmatpush1.bf16.msra.mxu0 0
    %352 = vmatprep.subr.bf16.mxu0 0
    %353 = vmatpush1.bf16.msra.mxu0 0
    %354 = vmatprep.subr.bf16.mxu0 0
    %355 = vmatpush1.bf16.msra.mxu0 0
    %356 = vmatprep.subr.bf16.mxu0 0
    %357 = vmatpush1.bf16.msra.mxu0 0
    %358 = vmatprep.mubr.bf16.mxu0 0
    %359 = vmatmul.mubr.bf16.gmra.mrb[0].mxu0 %v117
    %v360 = vpop.f32.mrb[0].mxu0
    %v361 = vadd.f32 %v97, %v360
    %v362 = vpop.f32.mrb[0].mxu0
    %v363 = vpop.f32.mrb[0].mxu0
    %v364 = vadd.f32 %v97, %v363
    %v365 = vpop.f32.mrb[0].mxu0
    %366 = vmatprep.mubr.bf16.mxu0 0
    %367 = vmatmul.mubr.bf16.gmra.mrb[0].mxu0 %v118
    %v368 = vpop.f32.mrb[0].mxu0
    %v369 = vadd.f32 %v97, %v368
    %v370 = vpop.f32.mrb[0].mxu0
    %v371 = vpop.f32.mrb[0].mxu0
    %v372 = vadd.f32 %v97, %v371
    %v373 = vpop.f32.mrb[0].mxu0
    %374 = vmatprep.mubr.bf16.mxu0 0
    %375 = vmatmul.mubr.bf16.gmra.mrb[0].mxu0 %v119
    %v376 = vpop.f32.mrb[0].mxu0
    %v377 = vadd.f32 %v97, %v376
    %v378 = vpop.f32.mrb[0].mxu0
    %v379 = vpop.f32.mrb[0].mxu0
    %v380 = vadd.f32 %v97, %v379
    %v381 = vpop.f32.mrb[0].mxu0
    %382 = vmatprep.mubr.bf16.mxu0 0
    %383 = vmatmul.mubr.bf16.gmra.mrb[0].mxu0 %v120
    %v384 = vpop.f32.mrb[0].mxu0
    %v385 = vadd.f32 %v97, %v384
    %v386 = vpop.f32.mrb[0].mxu0
    %v387 = vpop.f32.mrb[0].mxu0
    %v388 = vadd.f32 %v97, %v387
    %v389 = vpop.f32.mrb[0].mxu0
    %390 = vdwg.mxu0
    %v391 = vpack.c.bf16 %v292, %v288
    %v392 = vpack.c.bf16 %v294, %v290
    %v393 = vpack.c.bf16 %v364, %v361
    %v394 = vpack.c.bf16 %v302, %v298
    %v395 = vpack.c.bf16 %v304, %v300
    %v396 = vpack.c.bf16 %v372, %v369
    %v397 = vpack.c.bf16 %v312, %v308
    %v398 = vpack.c.bf16 %v314, %v310
    %v399 = vpack.c.bf16 %v380, %v377
    %v400 = vpack.c.bf16 %v322, %v318
    %v401 = vpack.c.bf16 %v324, %v320
    %v402 = vpack.c.bf16 %v388, %v385
    %v415 = vunpack.c.l.b16 %v391
    %v416 = vunpack.c.l.b16 %v392
    %v417 = vunpack.c.l.b16 %v393
    %v418 = vunpack.c.h.b16 %v391
    %v419 = vunpack.c.h.b16 %v392
    %v420 = vunpack.c.h.b16 %v393
    %v421 = vunpack.c.l.b16 %v394
    %v422 = vunpack.c.l.b16 %v395
    %v423 = vunpack.c.l.b16 %v396
    %v424 = vunpack.c.h.b16 %v394
    %v425 = vunpack.c.h.b16 %v395
    %v426 = vunpack.c.h.b16 %v396
    %v427 = vunpack.c.l.b16 %v397
    %v428 = vunpack.c.l.b16 %v398
    %v429 = vunpack.c.l.b16 %v399
    %v430 = vunpack.c.h.b16 %v397
    %v431 = vunpack.c.h.b16 %v398
    %v432 = vunpack.c.h.b16 %v399
    %v433 = vunpack.c.l.b16 %v400
    %v434 = vunpack.c.l.b16 %v401
    %v435 = vunpack.c.l.b16 %v402
    %v436 = vunpack.c.h.b16 %v400
    %v437 = vunpack.c.h.b16 %v401
    %v438 = vunpack.c.h.b16 %v402
    %v439 = vpack.c.b16 %v416, %v415
    %v440 = vpack.c.b16 %v417, %v417
    %v441 = vpack.c.b16 %v419, %v418
    %v442 = vpack.c.b16 %v420, %v420
    %v443 = vpack.c.b16 %v422, %v421
    %v444 = vpack.c.b16 %v423, %v423
    %v445 = vpack.c.b16 %v425, %v424
    %v446 = vpack.c.b16 %v426, %v426
    %v447 = vpack.c.b16 %v428, %v427
    %v448 = vpack.c.b16 %v429, %v429
    %v449 = vpack.c.b16 %v431, %v430
    %v450 = vpack.c.b16 %v432, %v432
    %v451 = vpack.c.b16 %v434, %v433
    %v452 = vpack.c.b16 %v435, %v435
    %v453 = vpack.c.b16 %v437, %v436
    %v454 = vpack.c.b16 %v438, %v438
    %471 = vst [vmem:[#allocation7] sm:$0xff] %v439
    %472 = vst [vmem:[#allocation7 + $0x8] sm:$0xf] %v440
    %473 = vst [vmem:[#allocation7 + $0xc] sm:$0xff] %v441
    %474 = vst [vmem:[#allocation7 + $0x14] sm:$0xf] %v442
    %475 = vst [vmem:[#allocation7 + $0x18] sm:$0xff] %v443
    %476 = vst [vmem:[#allocation7 + $0x20] sm:$0xf] %v444
    %477 = vst [vmem:[#allocation7 + $0x24] sm:$0xff] %v445
    %478 = vst [vmem:[#allocation7 + $0x2c] sm:$0xf] %v446
    %479 = vst [vmem:[#allocation7 + $0x30] sm:$0xff] %v447
    %480 = vst [vmem:[#allocation7 + $0x38] sm:$0xf] %v448
    %481 = vst [vmem:[#allocation7 + $0x3c] sm:$0xff] %v449
    %482 = vst [vmem:[#allocation7 + $0x44] sm:$0xf] %v450
    %483 = vst [vmem:[#allocation7 + $0x48] sm:$0xff] %v451
    %484 = vst [vmem:[#allocation7 + $0x50] sm:$0xf] %v452
    %485 = vst [vmem:[#allocation7 + $0x54] sm:$0xff] %v453
    %486 = vst [vmem:[#allocation7 + $0x5c] sm:$0xf] %v454
    // Predicated region
    $region22: #{tpu_custom_call.1} parent=1 // pred_check
      _
    $region23: #{tpu_custom_call.1} parent=1 // pred_check_branch
      %488 = sbr.rel (0) target = $region25
    $region24: #{tpu_custom_call.1} parent=1 // pred_region
      %s490 = ssub.s32 1536, 1536
      %491 = vsyncadd [#allocation4], %s490
      %s492 = sshll.u32 [#allocation7], 4
      %s493 = int_to_ptr.vmem [resolvable:$true] %s492
      %498 = dma.vmem_to_hbm [thread:$0]  %s493, 1536, %s3, [#allocation4], 192, 192, 12
    $region25: #{tpu_custom_call.1} parent=1 // pred_fallthru
      _
    // Predicated region
    $region26: #{tpu_custom_call.1} parent=1 // pred_check
      _
    $region27: #{tpu_custom_call.1} parent=1 // pred_check_branch
      %500 = sbr.rel (0) target = $region29
    $region28: #{tpu_custom_call.1} parent=1 // pred_region
      %501 = dma.done [#allocation4], 1536
    $region29: #{tpu_custom_call.1} parent=1 // pred_fallthru
      _
    %502 = vsyncpa [#allocation3], 1
    %503 = vsyncpa [#allocation6], 1
    %504 = vsyncpa [#allocation4], 1

</llo_original>
